<compile_context>
chip_gen: v6e
topology: v6e:2x2x1
jax: 0.10.0
libtpu: 0.0.40
codegen_flags: <defaults>
</compile_context>

<pallas_src>
import jax
import jax.numpy as jnp
from jax.experimental import pallas as pl
from jax.experimental.pallas import tpu as pltpu

_LANE = 128


def _temp_scale_kernel(inv_t_ref, x_ref, o_ref):
    # inv_t_ref: (1, 1) f32 in SMEM (precomputed 1/temp).
    # x_ref / o_ref: (tr, 128) lane-dense VMEM tiles (last grid block may be
    # partial; Pallas masks the edge).
    inv_t = inv_t_ref[0, 0]
    # Multiply in f32, single cast to the output dtype (free VPU slack here).
    o_ref[...] = (x_ref[...].astype(jnp.float32) * inv_t).astype(o_ref.dtype)


def _device_tile_config():
    """(tile_bytes, vmem_limit_bytes or None) tuned per TPU generation."""
    try:
        kind = jax.devices()[0].device_kind.lower()
    except Exception:
        kind = ""
    if "v7" in kind:
        # ~0.35 us/step fixed overhead vs 3.2 TB/s HBM -> need big tiles; raise
        # the 32 MiB scoped-VMEM default (physical VMEM is 64 MiB per TC).
        return 8 << 20, 48 << 20
    if "v6" in kind:
        return 4 << 20, None  # 16 MiB double-buffered, within the 32 MiB default
    # v5e (16 MiB scoped default) and conservative fallback.
    return 2 << 20, None


def temp_scaler_forward(logits: jax.Array, temp: jax.Array, *,
                        tile_bytes: int | None = None) -> jax.Array:
    """Equivalent of TempScaler.forward: logits / temp (temp is a scalar parameter)."""
    if not jnp.issubdtype(logits.dtype, jnp.floating):
        # Match torch's int-tensor / float-parameter promotion.
        logits = logits.astype(jnp.float32)

    orig_shape = logits.shape
    dtype = logits.dtype
    itemsize = jnp.dtype(dtype).itemsize
    n = 1
    for d in orig_shape:
        n *= d

    dev_tile_bytes, vmem_limit = _device_tile_config()
    if tile_bytes is None:
        tile_bytes = dev_tile_bytes

    # Sublane multiple for the 2nd-to-last block dim: 8 (f32), 16 (bf16), 32 (int8).
    sublane = 8 * max(1, 4 // itemsize)

    # Lane-dense slab; rows NOT rounded up to whole tiles.
    rows = pl.cdiv(n, _LANE)
    tr_target = max(sublane, (tile_bytes // (_LANE * itemsize)) // sublane * sublane)
    tr = min(tr_target, pl.cdiv(rows, sublane) * sublane)
    num_tiles = pl.cdiv(rows, tr)            # last block may be partial

    padded = rows * _LANE
    flat = logits.reshape(-1)
    if padded != n:                          # only pad when n % 128 != 0
        flat = jnp.pad(flat, (0, padded - n))
    x2d = flat.reshape(rows, _LANE)

    # Precompute 1/temp in the wrapper; kernel body stays a pure splat + vmul.
    inv_t = (1.0 / jnp.asarray(temp, jnp.float32)).reshape(1, 1)

    compiler_kwargs = dict(
        dimension_semantics=("parallel",),   # shard the row axis across TCs where available
        # TODO(synk): on v7x verify 2-TC sharding; if the grid loop runs on one
        # core, switch this axis to pltpu.CORE_PARALLEL / pl.core_map.
    )
    if vmem_limit is not None:
        compiler_kwargs["vmem_limit_bytes"] = vmem_limit

    out2d = pl.pallas_call(
        _temp_scale_kernel,
        out_shape=jax.ShapeDtypeStruct((rows, _LANE), dtype),
        grid_spec=pl.GridSpec(
            grid=(num_tiles,),
            in_specs=[
                pl.BlockSpec(memory_space=pltpu.MemorySpace.SMEM),   # 1/temp scalar
                pl.BlockSpec((tr, _LANE), lambda i: (i, 0)),          # logits tile
            ],
            out_specs=pl.BlockSpec((tr, _LANE), lambda i: (i, 0)),
        ),
        compiler_params=pltpu.CompilerParams(**compiler_kwargs),
        cost_estimate=pl.CostEstimate(
            flops=n, transcendentals=0, bytes_accessed=2 * n * itemsize),
    )(inv_t, x2d)

    if padded != n:
        return out2d.reshape(-1)[:n].reshape(orig_shape)
    return out2d.reshape(orig_shape)          # free reshape on the common path


if __name__ == "__main__":
    key = jax.random.PRNGKey(0)

    # 1) Small classifier-logits shape, temp = 1.0 (module default init); n % 128 == 0,
    #    so no pad and no slice copy.
    B, C = 8, 32
    logits = jax.random.normal(key, (B, C), dtype=jnp.float32)
    temp = jnp.ones((1,), dtype=jnp.float32)          # nn.Parameter(torch.ones(1) * 1.0)
    out = temp_scaler_forward(logits, temp)
    jax.block_until_ready(out)
    ref = logits / temp[0]
    assert out.shape == logits.shape and out.dtype == logits.dtype
    assert jnp.allclose(out, ref, atol=1e-6, rtol=1e-6), "mismatch vs reference"

    # 2) Ragged shape (n % 128 != 0) with a forced tiny tile so the grid has a
    #    partial last block; non-trivial temperature exercises the reciprocal path.
    logits2 = jax.random.normal(jax.random.PRNGKey(1), (260, 10), dtype=jnp.float32)
    temp2 = jnp.asarray([1.5], dtype=jnp.float32)
    out2 = temp_scaler_forward(logits2, temp2, tile_bytes=8 * _LANE * 4)   # tr = 8 rows
    jax.block_until_ready(out2)
    ref2 = logits2 / temp2[0]
    # multiply-by-reciprocal may differ from true divide by ~1 ulp
    assert jnp.allclose(out2, ref2, atol=1e-5, rtol=1e-5), "mismatch vs reference (ragged path)"

    # 3) bf16 logits — the multiply runs in f32 and casts once, so it matches the
    #    f32 reference after a single rounding.
    logits3 = jax.random.normal(jax.random.PRNGKey(2), (16, 40), dtype=jnp.bfloat16)
    temp3 = jnp.asarray([2.0], dtype=jnp.float32)
    out3 = temp_scaler_forward(logits3, temp3)
    jax.block_until_ready(out3)
    ref3 = (logits3.astype(jnp.float32) / temp3[0]).astype(jnp.bfloat16)
    assert out3.dtype == jnp.bfloat16
    assert jnp.allclose(out3.astype(jnp.float32), ref3.astype(jnp.float32),
                        atol=1e-2, rtol=1e-2), "mismatch vs reference (bf16 path)"

    print("KERNEL_OK")
</pallas_src>

<mosaic_0001>
module attributes {stable_mosaic.version = 11 : i64} {
  func.func @_temp_scale_kernel(%arg0: i32, %arg1: memref<1x1xf32, #tpu.memory_space<smem>>, %arg2: memref<8x128xf32, #tpu.memory_space<vmem>>, %arg3: memref<8x128xf32, #tpu.memory_space<vmem>>) attributes {dimension_semantics = [#tpu.dimension_semantics<parallel>], iteration_bounds = array<i64: 1>, scalar_prefetch = 0 : i64, scratch_operands = 0 : i64, tpu.core_type = #tpu.core_type<tc>, window_params = [{transform_indices = @transform_0, window_bounds = array<i64: 1, 1>}, {transform_indices = @transform_1, window_bounds = array<i64: 8, 128>}, {transform_indices = @transform_2, window_bounds = array<i64: 8, 128>}]} {
    %c0 = arith.constant 0 : index
    %c0_0 = arith.constant 0 : index
    %0 = memref.load %arg1[%c0, %c0_0] : memref<1x1xf32, #tpu.memory_space<smem>>
    %c0_1 = arith.constant 0 : index
    %c0_2 = arith.constant 0 : index
    %1 = vector.load %arg2[%c0_1, %c0_2] : memref<8x128xf32, #tpu.memory_space<vmem>>, vector<8x128xf32>
    %2 = vector.broadcast %0 : f32 to vector<8x128xf32>
    %3 = arith.mulf %1, %2 : vector<8x128xf32>
    %c0_3 = arith.constant 0 : index
    %c0_4 = arith.constant 0 : index
    %4 = vector.load %arg3[%c0_3, %c0_4] : memref<8x128xf32, #tpu.memory_space<vmem>>, vector<8x128xf32>
    tpu.vector_store %arg3[%c0_3, %c0_4], %3 {strides = array<i32>} : memref<8x128xf32, #tpu.memory_space<vmem>>, vector<8x128xf32>,
    return
  }
  func.func @transform_0(%arg0: i32) -> (i32, i32) {
    %c0_i32 = arith.constant 0 : i32
    %c0_i32_0 = arith.constant 0 : i32
    %c0_i32_1 = arith.constant 0 : i32
    return %c0_i32, %c0_i32_0 : i32, i32
  }
  func.func @transform_1(%arg0: i32) -> (i32, i32) {
    %c0_i32 = arith.constant 0 : i32
    %c0_i32_0 = arith.constant 0 : i32
    return %arg0, %c0_i32 : i32, i32
  }
  func.func @transform_2(%arg0: i32) -> (i32, i32) {
    %c0_i32 = arith.constant 0 : i32
    %c0_i32_0 = arith.constant 0 : i32
    return %arg0, %c0_i32 : i32, i32
  }
}

</mosaic_0001>

<llo_original>
// kernel: tpu_custom_call.1
$region0: #{tpu_custom_call.1}
  #allocation0 [shape = 'u32[]', space=smem, size = 0x4, offset = 0x4, fixed_abs, tag = 'smem constant byte address 0x4 - core index']
  #allocation1 [shape = 'u32[144,128]{1,0:T(1,128)}', space=vmem, size = 0x12000, scoped, tag = 'internal scratch']
  #allocation2 [shape = 'f32[1,1]{1,0:T(1,128)S(6)}', space=smem, size = 0x200, scoped, tag = 'scoped memory for tpu_custom_call.1']
  %s0 = inlined_call_operand.<no memory space> [shape: f32[1,1], index: 0, kind: input, shape index: {}]
  %s1 = inlined_call_operand.vmem [shape: f32[2,128], index: 1, kind: input, shape index: {}]
  %s2 = inlined_call_operand.hbm [shape: f32[2,128], index: 2, kind: output, shape index: {}]
  %s3 = sld [smem:[#allocation0]]
  $region18: #{tpu_custom_call.1} parent=0
    _
  %s5 = ssub.s32 1, %s3
  %s6 = scalar_select 0, %s5, %s3
  %7 = sst [smem:[#allocation2]] %s0
  $region1: #{tpu_custom_call.1} parent=0
    #allocation3 [shape = 'u8[4096]{0}', space=vmem, size = 0x1000, scoped, tag = 'output window, operand 0, single buffered']
    #allocation4 [shape = 's32[1]{0}', space=sflag, size = 0x4, scoped, tag = 'scoped memory for tpu_custom_call.1']
    %8 = vsyncpa [#allocation4], 0
    // Predicated region
    $region2: #{tpu_custom_call.1} parent=1 // pred_check
      _
    $region3: #{tpu_custom_call.1} parent=1 // pred_check_branch
      %10 = sbr.rel (0) target = $region5
    $region4: #{tpu_custom_call.1} parent=1 // pred_region
      _
    $region5: #{tpu_custom_call.1} parent=1 // pred_fallthru
      _
    // Predicated region
    $region6: #{tpu_custom_call.1} parent=1 // pred_check
      _
    $region7: #{tpu_custom_call.1} parent=1 // pred_check_branch
      %12 = sbr.rel (0) target = $region9
    $region8: #{tpu_custom_call.1} parent=1 // pred_region
      _
    $region9: #{tpu_custom_call.1} parent=1 // pred_fallthru
      _
    %s13 = sld [smem:[#allocation2]]
    %v14 = vld [vmem:[%s1] sm:$0xff]
    %v15 = vstv %s13
    %v16 = vmul.f32 %v14, %v15
    %17 = vst [vmem:[#allocation3] sm:$0xff] %v16
    // Predicated region
    $region10: #{tpu_custom_call.1} parent=1 // pred_check
      _
    $region11: #{tpu_custom_call.1} parent=1 // pred_check_branch
      %19 = sbr.rel (0) target = $region13
    $region12: #{tpu_custom_call.1} parent=1 // pred_region
      %s21 = ssub.s32 128, 32
      %22 = vsyncadd [#allocation4], %s21
      %s23 = sshll.u32 [#allocation3], 4
      %s24 = int_to_ptr.vmem [resolvable:$true] %s23
      %29 = dma.vmem_to_hbm [thread:$0]  %s24, 32, %s2, [#allocation4], 32, 32, 2
    $region13: #{tpu_custom_call.1} parent=1 // pred_fallthru
      _
    // Predicated region
    $region14: #{tpu_custom_call.1} parent=1 // pred_check
      _
    $region15: #{tpu_custom_call.1} parent=1 // pred_check_branch
      %31 = sbr.rel (0) target = $region17
    $region16: #{tpu_custom_call.1} parent=1 // pred_region
      %32 = dma.done [#allocation4], 128
    $region17: #{tpu_custom_call.1} parent=1 // pred_fallthru
      _
    %33 = vsyncpa [#allocation4], 1

</llo_original>
